<compile_context>
chip_gen: v6e
topology: v6e:2x2x1
jax: 0.10.0
libtpu: 0.0.40
codegen_flags: <defaults>
</compile_context>

<pallas_src>
import functools
import math

import jax
import jax.numpy as jnp
from jax.experimental import pallas as pl
from jax.experimental.pallas import tpu as pltpu


# --------------------------------------------------------------------------- #
# kernel body
# --------------------------------------------------------------------------- #
def _attn_body(xq_ref, xk_ref, xv_ref, wq_ref, bq_ref, wk_ref, bk_ref,
               out_ref, attn_ref, *, compute_dtype, exp_dtype, kv_len):
    Bt, S, E = xq_ref.shape

    # (Bt,S,E)->(Bt*S,E): free leading-dim merge (S padded to a multiple of 8
    # in the wrapper); feeds the MXU Bt*S rows per projection.
    xq = xq_ref[...].reshape(Bt * S, E).astype(compute_dtype)
    xk = xk_ref[...].reshape(Bt * S, E).astype(compute_dtype)

    # Q / K projections: bf16 operands (default) with f32 accumulation; the
    # 1/sqrt(E) scale is pre-folded into wq/bq, biases added in f32.
    q = jnp.dot(xq, wq_ref[...], preferred_element_type=jnp.float32) + bq_ref[...]
    k = jnp.dot(xk, wk_ref[...], preferred_element_type=jnp.float32) + bk_ref[...]
    q = q.reshape(Bt, S, E).astype(compute_dtype)
    k = k.reshape(Bt, S, E).astype(compute_dtype)

    # Batched scores contracting the last dim of both operands -> the MXU
    # consumes K directly, no explicit k.T / XLU transpose.
    scores = jnp.einsum('bqd,bkd->bqk', q, k,
                        preferred_element_type=jnp.float32)          # (Bt,S,S)

    # Key positions beyond kv_len are wrapper padding -> mask them out.
    if kv_len < S:
        col = jax.lax.broadcasted_iota(jnp.int32, (1, 1, S), 2)
        scores = jnp.where(col < kv_len, scores, -jnp.inf)

    # Numerically stable softmax.  exp runs in bf16 on bf16-EUP chips
    # (v6e/v7x); the denominator is accumulated in f32 and its reciprocal is
    # computed on the otherwise-idle EUP slot.
    scores = scores - jnp.max(scores, axis=-1, keepdims=True)
    e = jnp.exp(scores.astype(exp_dtype))
    denom = jnp.sum(e.astype(jnp.float32), axis=-1, keepdims=True)
    inv = pl.reciprocal(denom, approx=True)
    attn = e.astype(compute_dtype) * inv.astype(compute_dtype)       # (Bt,S,S)

    # Attention-weighted sum of values (MXU, batched, f32 accumulation).
    xv = xv_ref[...].astype(compute_dtype)
    out = jnp.einsum('bqk,bkd->bqd', attn, xv,
                     preferred_element_type=jnp.float32)             # (Bt,S,E)

    # Store to the (possibly lane-dense flattened) output block shapes.
    out_ref[...] = out.reshape(out_ref.shape).astype(out_ref.dtype)
    if attn_ref is not None:
        attn_ref[...] = attn.reshape(attn_ref.shape).astype(attn_ref.dtype)


def _kernel_with_attn(xq, xk, xv, wq, bq, wk, bk, out_ref, attn_ref, *,
                      compute_dtype, exp_dtype, kv_len):
    _attn_body(xq, xk, xv, wq, bq, wk, bk, out_ref, attn_ref,
               compute_dtype=compute_dtype, exp_dtype=exp_dtype, kv_len=kv_len)


def _kernel_out_only(xq, xk, xv, wq, bq, wk, bk, out_ref, *,
                     compute_dtype, exp_dtype, kv_len):
    _attn_body(xq, xk, xv, wq, bq, wk, bk, out_ref, None,
               compute_dtype=compute_dtype, exp_dtype=exp_dtype, kv_len=kv_len)


# --------------------------------------------------------------------------- #
# per-generation configuration & tiling
# --------------------------------------------------------------------------- #
def _chip_config():
    kind = ""
    try:
        kind = jax.devices()[0].device_kind.lower()
    except Exception:
        pass
    if ("v7" in kind) or ("7x" in kind) or ("tpu7" in kind):
        # v7x: 64 MiB VMEM per TC, 2 TCs, bf16 EUP -> cap scoped VMEM at 48 MiB.
        return dict(vmem_limit=48 * 2**20, vmem_budget=48 * 2**20,
                    num_cores=2, bf16_eup=True)
    if "v6" in kind:
        # v6e: 128 MiB VMEM, single TC, bf16 EUP.
        return dict(vmem_limit=96 * 2**20, vmem_budget=96 * 2**20,
                    num_cores=1, bf16_eup=True)
    if ("v5 lite" in kind) or ("v5e" in kind) or ("v5lite" in kind):
        # v5e: 128 MiB VMEM, single TC, no bf16 VPU/EUP -> exp stays f32.
        return dict(vmem_limit=96 * 2**20, vmem_budget=96 * 2**20,
                    num_cores=1, bf16_eup=False)
    # unknown chip: conservative defaults, leave scoped-VMEM limit alone.
    return dict(vmem_limit=None, vmem_budget=16 * 2**20,
                num_cores=1, bf16_eup=False)


def _pick_batch_tile(B, S, E, *, num_cores, vmem_budget, itemsize):
    """Pick Bt | B.

    Single-TC chips (v5e/v6e): target up to ~1024 projection rows (Bt*S) per
    grid step (per-step overhead ~0.35us); Bt=B is fine.  v7x: additionally
    prefer >=4 grid steps so dimension_semantics=("parallel",) can balance the
    2 TensorCores.  Always respect the per-chip VMEM budget.
    """
    divisors = [d for d in range(1, B + 1) if B % d == 0]

    def vmem_bytes(bt):
        io = 2 * bt * (3 * S * E + S * E + S * S) * itemsize     # dbl-buffered blocks
        live = bt * (4 * S * S + 4 * S * E) * 4                  # f32 intermediates
        weights = 2 * (E * E + E) * 4
        return io + live + weights

    target_rows = 1024
    ok = [d for d in divisors
          if d * S <= target_rows and vmem_bytes(d) <= vmem_budget // 2]
    if not ok:
        ok = [d for d in divisors if vmem_bytes(d) <= vmem_budget // 2] or [1]
    bt = max(ok)
    if num_cores > 1:
        balanced = ([d for d in ok if B // d >= 4]
                    or [d for d in ok if B // d >= num_cores])
        if balanced:
            bt = max(balanced)
    return bt


# --------------------------------------------------------------------------- #
# wrapper
# --------------------------------------------------------------------------- #
def single_head_attention(query, key, value, wq, bq, wk, bk, *, mask=None,
                          batch_tile=None, compute_dtype=jnp.bfloat16,
                          attn_dtype=None, return_attn=True):
    """query/key/value: (B, S, E); wq/wk: (E, E) torch-layout (out,in); bq/bk: (E,).

    Returns (output (B, S, E), attn (B, 1, S, S)) matching the PyTorch module
    (or just output if return_attn=False).
    """
    assert mask is None, "TODO(synk): user-supplied attention mask not implemented"
    B, S0, E = query.shape
    dtype = query.dtype
    cfg = _chip_config()

    compute_dtype = jnp.dtype(compute_dtype)
    use_bf16_exp = (compute_dtype == jnp.dtype(jnp.bfloat16)) and cfg["bf16_eup"]
    exp_dtype = jnp.dtype(jnp.bfloat16) if use_bf16_exp else jnp.dtype(jnp.float32)
    attn_dtype = jnp.dtype(compute_dtype if attn_dtype is None else attn_dtype)

    # Pad S to a multiple of 8 so the in-kernel (Bt,S,E)<->(Bt*S,E) reshapes
    # are layout no-ops; padded key positions are masked inside the kernel.
    S = ((S0 + 7) // 8) * 8
    if S != S0:
        pad = ((0, 0), (0, S - S0), (0, 0))
        query = jnp.pad(query, pad)
        key = jnp.pad(key, pad)
        value = jnp.pad(value, pad)

    # Pre-transpose Linear weights so the kernel does x @ W, fold the 1/sqrt(E)
    # scale into the Q projection, cast weights to the MXU compute dtype and
    # keep biases in f32 (added after f32 accumulation).
    scale = 1.0 / math.sqrt(E)
    wq_t = (wq.T * scale).astype(compute_dtype)
    wk_t = wk.T.astype(compute_dtype)
    bq2 = (bq * scale).reshape(1, E).astype(jnp.float32)
    bk2 = bk.reshape(1, E).astype(jnp.float32)

    Bt = batch_tile if batch_tile is not None else _pick_batch_tile(
        B, S, E, num_cores=cfg["num_cores"], vmem_budget=cfg["vmem_budget"],
        itemsize=jnp.dtype(dtype).itemsize)
    assert B % Bt == 0, "batch tile must divide batch size"
    grid = (B // Bt,)

    # Lane-dense outputs when the natural last dim is narrower than 128 lanes.
    flatten_out = (E % 128 != 0)
    flatten_attn = (S % 128 != 0)

    in_specs = [
        pl.BlockSpec((Bt, S, E), lambda b: (b, 0, 0)),   # query
        pl.BlockSpec((Bt, S, E), lambda b: (b, 0, 0)),   # key
        pl.BlockSpec((Bt, S, E), lambda b: (b, 0, 0)),   # value
        # grid-invariant weights/biases: constant block index => fetched once
        pl.BlockSpec((E, E), lambda b: (0, 0)),          # wq^T * scale
        pl.BlockSpec((1, E), lambda b: (0, 0)),          # bq * scale
        pl.BlockSpec((E, E), lambda b: (0, 0)),          # wk^T
        pl.BlockSpec((1, E), lambda b: (0, 0)),          # bk
    ]

    if flatten_out:
        out_struct = jax.ShapeDtypeStruct((B, 1, S * E), dtype)
        out_spec = pl.BlockSpec((Bt, 1, S * E), lambda b: (b, 0, 0))
    else:
        out_struct = jax.ShapeDtypeStruct((B, S, E), dtype)
        out_spec = pl.BlockSpec((Bt, S, E), lambda b: (b, 0, 0))

    if return_attn:
        if flatten_attn:
            attn_struct = jax.ShapeDtypeStruct((B, 1, S * S), attn_dtype)
            attn_spec = pl.BlockSpec((Bt, 1, S * S), lambda b: (b, 0, 0))
        else:
            attn_struct = jax.ShapeDtypeStruct((B, S, S), attn_dtype)
            attn_spec = pl.BlockSpec((Bt, S, S), lambda b: (b, 0, 0))
        out_shape = (out_struct, attn_struct)
        out_specs = (out_spec, attn_spec)
        kern = functools.partial(_kernel_with_attn, compute_dtype=compute_dtype,
                                 exp_dtype=exp_dtype, kv_len=S0)
    else:
        out_shape = out_struct
        out_specs = out_spec
        kern = functools.partial(_kernel_out_only, compute_dtype=compute_dtype,
                                 exp_dtype=exp_dtype, kv_len=S0)

    cost = pl.CostEstimate(
        flops=4 * B * S * E * E + 4 * B * S * S * E,
        transcendentals=B * S * S,
        bytes_accessed=(4 * B * S * E * jnp.dtype(dtype).itemsize
                        + 2 * E * E * jnp.dtype(compute_dtype).itemsize
                        + (B * S * S * jnp.dtype(attn_dtype).itemsize
                           if return_attn else 0)),
    )

    cp_kwargs = dict(dimension_semantics=("parallel",))
    if cfg["vmem_limit"] is not None:
        cp_kwargs["vmem_limit_bytes"] = cfg["vmem_limit"]

    results = pl.pallas_call(
        kern,
        out_shape=out_shape,
        grid_spec=pltpu.PrefetchScalarGridSpec(
            num_scalar_prefetch=0,
            grid=grid,
            in_specs=in_specs,
            out_specs=out_specs,
        ),
        compiler_params=pltpu.CompilerParams(**cp_kwargs),
        cost_estimate=cost,
    )(query, key, value, wq_t, bq2, wk_t, bk2)

    if return_attn:
        out, attn = results
    else:
        out, attn = results, None

    out = out.reshape(B, S, E)
    if S != S0:
        out = out[:, :S0, :]
    if attn is None:
        return out
    attn = attn.reshape(B, 1, S, S)
    if S != S0:
        attn = attn[:, :, :S0, :S0]
    return out, attn


# --------------------------------------------------------------------------- #
# plain-JAX reference (mirror of the PyTorch forward in eval mode)
# --------------------------------------------------------------------------- #
def _reference(query, key, value, wq, bq, wk, bk):
    E = query.shape[-1]
    q = query @ wq.T + bq
    k = key @ wk.T + bk
    scores = jnp.einsum('bse,bte->bst', q, k) / math.sqrt(E)
    attn = jax.nn.softmax(scores, axis=-1)
    out = jnp.einsum('bst,bte->bse', attn, value)
    return out, attn[:, None, :, :]


if __name__ == "__main__":
    B, S, E = 2, 8, 32
    key0 = jax.random.PRNGKey(0)
    k_q, k_k, k_v, k_wq, k_bq, k_wk, k_bk = jax.random.split(key0, 7)

    query = jax.random.normal(k_q, (B, S, E), dtype=jnp.float32)
    key_in = jax.random.normal(k_k, (B, S, E), dtype=jnp.float32)
    value = jax.random.normal(k_v, (B, S, E), dtype=jnp.float32)

    # deterministic parameter init (PyTorch nn.Linear-style uniform bound)
    bound = 1.0 / math.sqrt(E)
    wq = jax.random.uniform(k_wq, (E, E), jnp.float32, -bound, bound)
    bq = jax.random.uniform(k_bq, (E,), jnp.float32, -bound, bound)
    wk = jax.random.uniform(k_wk, (E, E), jnp.float32, -bound, bound)
    bk = jax.random.uniform(k_bk, (E,), jnp.float32, -bound, bound)

    ref_out, ref_attn = _reference(query, key_in, value, wq, bq, wk, bk)

    # 1) default path: bf16 MXU operands / f32 accumulation (bf16 exp on v6e/v7x)
    out, attn = single_head_attention(query, key_in, value, wq, bq, wk, bk)
    jax.block_until_ready((out, attn))
    assert out.shape == (B, S, E) and attn.shape == (B, 1, S, S)
    assert jnp.allclose(out, ref_out, atol=5e-2, rtol=5e-2), "bf16 out mismatch"
    assert jnp.allclose(attn.astype(jnp.float32), ref_attn,
                        atol=3e-2, rtol=5e-2), "bf16 attn mismatch"

    # 2) f32 compute path: tight parity with the f32 PyTorch reference
    out32, attn32 = single_head_attention(query, key_in, value, wq, bq, wk, bk,
                                          compute_dtype=jnp.float32)
    jax.block_until_ready((out32, attn32))
    assert jnp.allclose(out32, ref_out, atol=2e-3, rtol=2e-3), "f32 out mismatch"
    assert jnp.allclose(attn32.astype(jnp.float32), ref_attn,
                        atol=2e-3, rtol=2e-3), "f32 attn mismatch"

    # 3) ragged sequence length (S not a multiple of 8): wrapper padding + key masking
    S2 = 6
    q2, kk2, v2 = query[:, :S2], key_in[:, :S2], value[:, :S2]
    ref_out2, ref_attn2 = _reference(q2, kk2, v2, wq, bq, wk, bk)
    out2, attn2 = single_head_attention(q2, kk2, v2, wq, bq, wk, bk)
    jax.block_until_ready((out2, attn2))
    assert out2.shape == (B, S2, E) and attn2.shape == (B, 1, S2, S2)
    assert jnp.allclose(out2, ref_out2, atol=5e-2, rtol=5e-2), "padded out mismatch"
    assert jnp.allclose(attn2.astype(jnp.float32), ref_attn2,
                        atol=3e-2, rtol=5e-2), "padded attn mismatch"

    # 4) attn-free path (skips the B*S*S attn writeback entirely)
    out_only = single_head_attention(query, key_in, value, wq, bq, wk, bk,
                                     return_attn=False)
    jax.block_until_ready(out_only)
    assert out_only.shape == (B, S, E)
    assert jnp.allclose(out_only, ref_out, atol=5e-2, rtol=5e-2), "no-attn out mismatch"

    print("KERNEL_OK")
</pallas_src>

<mosaic_0001>
module attributes {stable_mosaic.version = 11 : i64} {
  func.func @_kernel_with_attn(%arg0: i32, %arg1: memref<2x8x32xf32, #tpu.memory_space<vmem>>, %arg2: memref<2x8x32xf32, #tpu.memory_space<vmem>>, %arg3: memref<2x8x32xf32, #tpu.memory_space<vmem>>, %arg4: memref<32x32xbf16, #tpu.memory_space<vmem>>, %arg5: memref<1x32xf32, #tpu.memory_space<vmem>>, %arg6: memref<32x32xbf16, #tpu.memory_space<vmem>>, %arg7: memref<1x32xf32, #tpu.memory_space<vmem>>, %arg8: memref<2x1x256xf32, #tpu.memory_space<vmem>>, %arg9: memref<2x1x64xbf16, #tpu.memory_space<vmem>>) attributes {dimension_semantics = [#tpu.dimension_semantics<parallel>], iteration_bounds = array<i64: 1>, scalar_prefetch = 0 : i64, scratch_operands = 0 : i64, tpu.core_type = #tpu.core_type<tc>, window_params = [{transform_indices = @transform_0, window_bounds = array<i64: 2, 8, 32>}, {transform_indices = @transform_1, window_bounds = array<i64: 2, 8, 32>}, {transform_indices = @transform_2, window_bounds = array<i64: 2, 8, 32>}, {pipeline_mode = #tpu.pipeline_mode<synchronous>, transform_indices = @transform_3, window_bounds = array<i64: 32, 32>}, {pipeline_mode = #tpu.pipeline_mode<synchronous>, transform_indices = @transform_4, window_bounds = array<i64: 1, 32>}, {pipeline_mode = #tpu.pipeline_mode<synchronous>, transform_indices = @transform_5, window_bounds = array<i64: 32, 32>}, {pipeline_mode = #tpu.pipeline_mode<synchronous>, transform_indices = @transform_6, window_bounds = array<i64: 1, 32>}, {transform_indices = @transform_7, window_bounds = array<i64: 2, 1, 256>}, {transform_indices = @transform_8, window_bounds = array<i64: 2, 1, 64>}]} {
    %c0 = arith.constant 0 : index
    %c0_0 = arith.constant 0 : index
    %c0_1 = arith.constant 0 : index
    %0 = vector.load %arg1[%c0, %c0_0, %c0_1] : memref<2x8x32xf32, #tpu.memory_space<vmem>>, vector<2x8x32xf32>
    %1 = vector.shape_cast %0 : vector<2x8x32xf32> to vector<16x32xf32>
    %2 = arith.truncf %1 : vector<16x32xf32> to vector<16x32xbf16>
    %c0_2 = arith.constant 0 : index
    %c0_3 = arith.constant 0 : index
    %c0_4 = arith.constant 0 : index
    %3 = vector.load %arg2[%c0_2, %c0_3, %c0_4] : memref<2x8x32xf32, #tpu.memory_space<vmem>>, vector<2x8x32xf32>
    %4 = vector.shape_cast %3 : vector<2x8x32xf32> to vector<16x32xf32>
    %5 = arith.truncf %4 : vector<16x32xf32> to vector<16x32xbf16>
    %c0_5 = arith.constant 0 : index
    %c0_6 = arith.constant 0 : index
    %6 = vector.load %arg4[%c0_5, %c0_6] : memref<32x32xbf16, #tpu.memory_space<vmem>>, vector<32x32xbf16>
    %cst = arith.constant dense<0.000000e+00> : vector<16x32xf32>
    %7 = tpu.matmul %2, %6, %cst {dimension_numbers = #tpu.dot_dimension_numbers<[1], [0], [0], [1], [0, 0, 1, 1], [], []>} : vector<16x32xbf16>, vector<32x32xbf16>, vector<16x32xf32> -> vector<16x32xf32>
    %c0_7 = arith.constant 0 : index
    %c0_8 = arith.constant 0 : index
    %8 = vector.load %arg5[%c0_7, %c0_8] : memref<1x32xf32, #tpu.memory_space<vmem>>, vector<1x32xf32>
    %9 = vector.broadcast %8 : vector<1x32xf32> to vector<16x32xf32>
    %10 = arith.addf %7, %9 : vector<16x32xf32>
    %c0_9 = arith.constant 0 : index
    %c0_10 = arith.constant 0 : index
    %11 = vector.load %arg6[%c0_9, %c0_10] : memref<32x32xbf16, #tpu.memory_space<vmem>>, vector<32x32xbf16>
    %cst_11 = arith.constant dense<0.000000e+00> : vector<16x32xf32>
    %12 = tpu.matmul %5, %11, %cst_11 {dimension_numbers = #tpu.dot_dimension_numbers<[1], [0], [0], [1], [0, 0, 1, 1], [], []>} : vector<16x32xbf16>, vector<32x32xbf16>, vector<16x32xf32> -> vector<16x32xf32>
    %c0_12 = arith.constant 0 : index
    %c0_13 = arith.constant 0 : index
    %13 = vector.load %arg7[%c0_12, %c0_13] : memref<1x32xf32, #tpu.memory_space<vmem>>, vector<1x32xf32>
    %14 = vector.broadcast %13 : vector<1x32xf32> to vector<16x32xf32>
    %15 = arith.addf %12, %14 : vector<16x32xf32>
    %16 = vector.shape_cast %10 : vector<16x32xf32> to vector<2x8x32xf32>
    %17 = arith.truncf %16 : vector<2x8x32xf32> to vector<2x8x32xbf16>
    %18 = vector.shape_cast %15 : vector<16x32xf32> to vector<2x8x32xf32>
    %19 = arith.truncf %18 : vector<2x8x32xf32> to vector<2x8x32xbf16>
    "tpu.trace_start"() <{level = 10 : i32, message = "bqd,bkd->bqk"}> : () -> ()
    %cst_14 = arith.constant dense<0.000000e+00> : vector<2x8x8xf32>
    %20 = tpu.matmul %17, %19, %cst_14 {dimension_numbers = #tpu.dot_dimension_numbers<[2], [2], [1], [1], [0, 0, 0, 1, 1, 1], [0], [0]>} : vector<2x8x32xbf16>, vector<2x8x32xbf16>, vector<2x8x8xf32> -> vector<2x8x8xf32>
    "tpu.trace_stop"() : () -> ()
    %cst_15 = arith.constant dense<0xFF800000> : vector<2x8xf32>
    %21 = vector.multi_reduction <maximumf>, %20, %cst_15 [2] : vector<2x8x8xf32> to vector<2x8xf32>
    %22 = vector.shape_cast %21 : vector<2x8xf32> to vector<2x8x1xf32>
    %23 = vector.broadcast %22 : vector<2x8x1xf32> to vector<2x8x8xf32>
    %24 = arith.subf %20, %23 : vector<2x8x8xf32>
    %25 = math.exp %24 : vector<2x8x8xf32>
    %cst_16 = arith.constant dense<0.000000e+00> : vector<2x8xf32>
    %26 = vector.multi_reduction <add>, %25, %cst_16 [2] : vector<2x8x8xf32> to vector<2x8xf32>
    %27 = vector.shape_cast %26 : vector<2x8xf32> to vector<2x8x1xf32>
    %28 = tpu.reciprocal %27 {approx = true} : vector<2x8x1xf32> -> vector<2x8x1xf32>
    %29 = arith.truncf %25 : vector<2x8x8xf32> to vector<2x8x8xbf16>
    %30 = arith.truncf %28 : vector<2x8x1xf32> to vector<2x8x1xbf16>
    %31 = vector.broadcast %30 : vector<2x8x1xbf16> to vector<2x8x8xbf16>
    %32 = arith.mulf %29, %31 : vector<2x8x8xbf16>
    %c0_17 = arith.constant 0 : index
    %c0_18 = arith.constant 0 : index
    %c0_19 = arith.constant 0 : index
    %33 = vector.load %arg3[%c0_17, %c0_18, %c0_19] : memref<2x8x32xf32, #tpu.memory_space<vmem>>, vector<2x8x32xf32>
    %34 = arith.truncf %33 : vector<2x8x32xf32> to vector<2x8x32xbf16>
    "tpu.trace_start"() <{level = 10 : i32, message = "bqk,bkd->bqd"}> : () -> ()
    %cst_20 = arith.constant dense<0.000000e+00> : vector<2x8x32xf32>
    %35 = tpu.matmul %32, %34, %cst_20 {dimension_numbers = #tpu.dot_dimension_numbers<[2], [1], [1], [2], [0, 0, 0, 1, 1, 2], [0], [0]>} : vector<2x8x8xbf16>, vector<2x8x32xbf16>, vector<2x8x32xf32> -> vector<2x8x32xf32>
    "tpu.trace_stop"() : () -> ()
    %36 = vector.shape_cast %35 : vector<2x8x32xf32> to vector<2x1x256xf32>
    %c0_21 = arith.constant 0 : index
    %c0_22 = arith.constant 0 : index
    %c0_23 = arith.constant 0 : index
    %37 = vector.load %arg8[%c0_21, %c0_22, %c0_23] : memref<2x1x256xf32, #tpu.memory_space<vmem>>, vector<2x1x256xf32>
    tpu.vector_store %arg8[%c0_21, %c0_22, %c0_23], %36 {strides = array<i32>} : memref<2x1x256xf32, #tpu.memory_space<vmem>>, vector<2x1x256xf32>,
    %38 = vector.shape_cast %32 : vector<2x8x8xbf16> to vector<2x1x64xbf16>
    %c0_24 = arith.constant 0 : index
    %c0_25 = arith.constant 0 : index
    %c0_26 = arith.constant 0 : index
    %39 = vector.load %arg9[%c0_24, %c0_25, %c0_26] : memref<2x1x64xbf16, #tpu.memory_space<vmem>>, vector<2x1x64xbf16>
    tpu.vector_store %arg9[%c0_24, %c0_25, %c0_26], %38 {strides = array<i32>} : memref<2x1x64xbf16, #tpu.memory_space<vmem>>, vector<2x1x64xbf16>,
    return
  }
  func.func @transform_0(%arg0: i32) -> (i32, i32, i32) {
    %c0_i32 = arith.constant 0 : i32
    %c0_i32_0 = arith.constant 0 : i32
    %c0_i32_1 = arith.constant 0 : i32
    return %arg0, %c0_i32, %c0_i32_0 : i32, i32, i32
  }
  func.func @transform_1(%arg0: i32) -> (i32, i32, i32) {
    %c0_i32 = arith.constant 0 : i32
    %c0_i32_0 = arith.constant 0 : i32
    %c0_i32_1 = arith.constant 0 : i32
    return %arg0, %c0_i32, %c0_i32_0 : i32, i32, i32
  }
  func.func @transform_2(%arg0: i32) -> (i32, i32, i32) {
    %c0_i32 = arith.constant 0 : i32
    %c0_i32_0 = arith.constant 0 : i32
    %c0_i32_1 = arith.constant 0 : i32
    return %arg0, %c0_i32, %c0_i32_0 : i32, i32, i32
  }
  func.func @transform_3(%arg0: i32) -> (i32, i32) {
    %c0_i32 = arith.constant 0 : i32
    %c0_i32_0 = arith.constant 0 : i32
    %c0_i32_1 = arith.constant 0 : i32
    return %c0_i32, %c0_i32_0 : i32, i32
  }
  func.func @transform_4(%arg0: i32) -> (i32, i32) {
    %c0_i32 = arith.constant 0 : i32
    %c0_i32_0 = arith.constant 0 : i32
    %c0_i32_1 = arith.constant 0 : i32
    return %c0_i32, %c0_i32_0 : i32, i32
  }
  func.func @transform_5(%arg0: i32) -> (i32, i32) {
    %c0_i32 = arith.constant 0 : i32
    %c0_i32_0 = arith.constant 0 : i32
    %c0_i32_1 = arith.constant 0 : i32
    return %c0_i32, %c0_i32_0 : i32, i32
  }
  func.func @transform_6(%arg0: i32) -> (i32, i32) {
    %c0_i32 = arith.constant 0 : i32
    %c0_i32_0 = arith.constant 0 : i32
    %c0_i32_1 = arith.constant 0 : i32
    return %c0_i32, %c0_i32_0 : i32, i32
  }
  func.func @transform_7(%arg0: i32) -> (i32, i32, i32) {
    %c0_i32 = arith.constant 0 : i32
    %c0_i32_0 = arith.constant 0 : i32
    %c0_i32_1 = arith.constant 0 : i32
    return %arg0, %c0_i32, %c0_i32_0 : i32, i32, i32
  }
  func.func @transform_8(%arg0: i32) -> (i32, i32, i32) {
    %c0_i32 = arith.constant 0 : i32
    %c0_i32_0 = arith.constant 0 : i32
    %c0_i32_1 = arith.constant 0 : i32
    return %arg0, %c0_i32, %c0_i32_0 : i32, i32, i32
  }
}

</mosaic_0001>

<llo_original>
// kernel: tpu_custom_call.1
$region0: #{tpu_custom_call.1}
  #allocation0 [shape = 'u32[]', space=smem, size = 0x4, offset = 0x4, fixed_abs, tag = 'smem constant byte address 0x4 - core index']
  #allocation1 [shape = 'u32[144,128]{1,0:T(1,128)}', space=vmem, size = 0x12000, scoped, tag = 'internal scratch']
  %s0 = inlined_call_operand.hbm [shape: f32[2,8,32], index: 0, kind: input, shape index: {}]
  %s1 = inlined_call_operand.hbm [shape: f32[2,8,32], index: 1, kind: input, shape index: {}]
  %s2 = inlined_call_operand.hbm [shape: f32[2,8,32], index: 2, kind: input, shape index: {}]
  %s3 = inlined_call_operand.hbm [shape: bf16[32,32], index: 3, kind: input, shape index: {}]
  %s4 = inlined_call_operand.vmem [shape: f32[1,32], index: 4, kind: input, shape index: {}]
  %s5 = inlined_call_operand.hbm [shape: bf16[32,32], index: 5, kind: input, shape index: {}]
  %s6 = inlined_call_operand.vmem [shape: f32[1,32], index: 6, kind: input, shape index: {}]
  %s7 = inlined_call_operand.hbm [shape: f32[2,1,256], index: 7, kind: output, shape index: {0}]
  %s8 = inlined_call_operand.vmem [shape: bf16[2,1,64], index: 8, kind: output, shape index: {1}]
  %9 = xla_tuple %s7, %s8
  %s10 = sld [smem:[#allocation0]]
  $region66: #{tpu_custom_call.1} parent=0
    _
  %s12 = ssub.s32 1, %s10
  %s13 = scalar_select 0, %s12, %s10
  $region1: #{tpu_custom_call.1} parent=0
    #allocation2 [shape = 'u8[8192]{0}', space=vmem, size = 0x2000, scoped, tag = 'input window, operand 0, single buffered']
    #allocation3 [shape = 's32[1]{0}', space=sflag, size = 0x4, scoped, tag = 'scoped memory for tpu_custom_call.1']
    #allocation4 [shape = 's32[1]{0}', space=sflag, size = 0x4, scoped, tag = 'scoped memory for tpu_custom_call.1']
    #allocation5 [shape = 'u8[8192]{0}', space=vmem, size = 0x2000, scoped, tag = 'input window, operand 1, single buffered']
    #allocation6 [shape = 's32[1]{0}', space=sflag, size = 0x4, scoped, tag = 'scoped memory for tpu_custom_call.1']
    #allocation7 [shape = 'u8[8192]{0}', space=vmem, size = 0x2000, scoped, tag = 'input window, operand 2, single buffered']
    #allocation8 [shape = 'u8[8192]{0}', space=vmem, size = 0x2000, scoped, tag = 'input window, operand 3, single buffered']
    #allocation9 [shape = 's32[1]{0}', space=sflag, size = 0x4, scoped, tag = 'scoped memory for tpu_custom_call.1']
    #allocation10 [shape = 'u8[8192]{0}', space=vmem, size = 0x2000, scoped, tag = 'input window, operand 5, single buffered']
    #allocation11 [shape = 'u8[2048]{0}', space=vmem, size = 0x800, scoped, tag = 'output window, operand 0, single buffered']
    %14 = vsyncpa [#allocation3], 0
    %15 = vsyncpa [#allocation6], 0
    %16 = vsyncpa [#allocation9], 0
    %17 = vsyncpa [#allocation4], 0
    // Predicated region
    $region2: #{tpu_custom_call.1} parent=1 // pred_check
      _
    $region3: #{tpu_custom_call.1} parent=1 // pred_check_branch
      %19 = sbr.rel (0) target = $region5
    $region4: #{tpu_custom_call.1} parent=1 // pred_region
      %s21 = ssub.s32 256, 256
      %22 = vsyncadd [#allocation3], %s21
      %s23 = sshll.u32 [#allocation2], 4
      %s24 = int_to_ptr.vmem [resolvable:$true] %s23
      %29 = dma.hbm_to_vmem [thread:$0]  %s0, 256, %s24, [#allocation3], 128, 128, 8
    $region5: #{tpu_custom_call.1} parent=1 // pred_fallthru
      _
    // Predicated region
    $region6: #{tpu_custom_call.1} parent=1 // pred_check
      _
    $region7: #{tpu_custom_call.1} parent=1 // pred_check_branch
      %31 = sbr.rel (0) target = $region9
    $region8: #{tpu_custom_call.1} parent=1 // pred_region
      %s33 = ssub.s32 256, 256
      %34 = vsyncadd [#allocation6], %s33
      %s35 = sshll.u32 [#allocation5], 4
      %s36 = int_to_ptr.vmem [resolvable:$true] %s35
      %41 = dma.hbm_to_vmem [thread:$0]  %s1, 256, %s36, [#allocation6], 128, 128, 8
    $region9: #{tpu_custom_call.1} parent=1 // pred_fallthru
      _
    // Predicated region
    $region10: #{tpu_custom_call.1} parent=1 // pred_check
      _
    $region11: #{tpu_custom_call.1} parent=1 // pred_check_branch
      %43 = sbr.rel (0) target = $region13
    $region12: #{tpu_custom_call.1} parent=1 // pred_region
      %s45 = ssub.s32 256, 256
      %46 = vsyncadd [#allocation6], %s45
      %s47 = sshll.u32 [#allocation7], 4
      %s48 = int_to_ptr.vmem [resolvable:$true] %s47
      %53 = dma.hbm_to_vmem [thread:$0]  %s2, 256, %s48, [#allocation6], 128, 128, 8
    $region13: #{tpu_custom_call.1} parent=1 // pred_fallthru
      _
    // Predicated region
    $region14: #{tpu_custom_call.1} parent=1 // pred_check
      _
    $region15: #{tpu_custom_call.1} parent=1 // pred_check_branch
      %55 = sbr.rel (0) target = $region17
    $region16: #{tpu_custom_call.1} parent=1 // pred_region
      %s57 = ssub.s32 256, 256
      %58 = vsyncadd [#allocation9], %s57
      %s59 = sshll.u32 [#allocation8], 4
      %s60 = int_to_ptr.vmem [resolvable:$true] %s59
      %65 = dma.hbm_to_vmem [thread:$0]  %s3, 256, %s60, [#allocation9], 64, 64, 4
    $region17: #{tpu_custom_call.1} parent=1 // pred_fallthru
      _
    // Predicated region
    $region18: #{tpu_custom_call.1} parent=1 // pred_check
      _
    $region19: #{tpu_custom_call.1} parent=1 // pred_check_branch
      %67 = sbr.rel (0) target = $region21
    $region20: #{tpu_custom_call.1} parent=1 // pred_region
      _
    $region21: #{tpu_custom_call.1} parent=1 // pred_fallthru
      _
    // Predicated region
    $region22: #{tpu_custom_call.1} parent=1 // pred_check
      _
    $region23: #{tpu_custom_call.1} parent=1 // pred_check_branch
      %69 = sbr.rel (0) target = $region25
    $region24: #{tpu_custom_call.1} parent=1 // pred_region
      %s71 = ssub.s32 256, 256
      %72 = vsyncadd [#allocation9], %s71
      %s73 = sshll.u32 [#allocation10], 4
      %s74 = int_to_ptr.vmem [resolvable:$true] %s73
      %79 = dma.hbm_to_vmem [thread:$0]  %s5, 256, %s74, [#allocation9], 64, 64, 4
    $region25: #{tpu_custom_call.1} parent=1 // pred_fallthru
      _
    // Predicated region
    $region26: #{tpu_custom_call.1} parent=1 // pred_check
      _
    $region27: #{tpu_custom_call.1} parent=1 // pred_check_branch
      %81 = sbr.rel (0) target = $region29
    $region28: #{tpu_custom_call.1} parent=1 // pred_region
      _
    $region29: #{tpu_custom_call.1} parent=1 // pred_fallthru
      _
    // Predicated region
    $region30: #{tpu_custom_call.1} parent=1 // pred_check
      _
    $region31: #{tpu_custom_call.1} parent=1 // pred_check_branch
      %83 = sbr.rel (0) target = $region33
    $region32: #{tpu_custom_call.1} parent=1 // pred_region
      %84 = dma.done [#allocation3], 256
    $region33: #{tpu_custom_call.1} parent=1 // pred_fallthru
      _
    // Predicated region
    $region34: #{tpu_custom_call.1} parent=1 // pred_check
      _
    $region35: #{tpu_custom_call.1} parent=1 // pred_check_branch
      %86 = sbr.rel (0) target = $region37
    $region36: #{tpu_custom_call.1} parent=1 // pred_region
      %87 = dma.done [#allocation6], 256
    $region37: #{tpu_custom_call.1} parent=1 // pred_fallthru
      _
    // Predicated region
    $region38: #{tpu_custom_call.1} parent=1 // pred_check
      _
    $region39: #{tpu_custom_call.1} parent=1 // pred_check_branch
      %89 = sbr.rel (0) target = $region41
    $region40: #{tpu_custom_call.1} parent=1 // pred_region
      %90 = dma.done [#allocation6], 256
    $region41: #{tpu_custom_call.1} parent=1 // pred_fallthru
      _
    // Predicated region
    $region42: #{tpu_custom_call.1} parent=1 // pred_check
      _
    $region43: #{tpu_custom_call.1} parent=1 // pred_check_branch
      %92 = sbr.rel (0) target = $region45
    $region44: #{tpu_custom_call.1} parent=1 // pred_region
      %93 = dma.done [#allocation9], 256
    $region45: #{tpu_custom_call.1} parent=1 // pred_fallthru
      _
    // Predicated region
    $region46: #{tpu_custom_call.1} parent=1 // pred_check
      _
    $region47: #{tpu_custom_call.1} parent=1 // pred_check_branch
      %95 = sbr.rel (0) target = $region49
    $region48: #{tpu_custom_call.1} parent=1 // pred_region
      %96 = dma.done [#allocation9], 256
    $region49: #{tpu_custom_call.1} parent=1 // pred_fallthru
      _
    %v98 = vld [vmem:[#allocation2] sm:$0xff]
    %v99 = vld [vmem:[#allocation2 + $0x8] sm:$0xff]
    %v100 = vpack.c.bf16 %v99, %v98
    %v101 = vld [vmem:[#allocation5] sm:$0xff]
    %v102 = vld [vmem:[#allocation5 + $0x8] sm:$0xff]
    %v103 = vpack.c.bf16 %v102, %v101
    %v104 = vld [vmem:[#allocation8] sm:$0xf]
    %v105 = vld [vmem:[#allocation8 + $0x4] sm:$0xf]
    %v106 = vld [vmem:[#allocation8 + $0x8] sm:$0xf]
    %v107 = vld [vmem:[#allocation8 + $0xc] sm:$0xf]
    %v108 = vld [vmem:[%s4] sm:$0x1]
    %v110 = vlaneseq
    %v111 = vshrl.u32 %v110, 7
    %v112 = vsub.s32 0, %v111
    %v113 = vrot.slane %v108, %v112
    %v119 = vunpack.c.l.b16 %v104
    %v120 = vunpack.c.l.b16 %v105
    %v121 = vunpack.c.l.b16 %v106
    %v122 = vunpack.c.l.b16 %v107
    %v123 = vpack.c.b16 %v120, %v119
    %v124 = vpack.c.b16 %v122, %v121
    %vm127 = vcmask 261120
    %v129 = vsel %vm127, %v100, 0
    %131 = vmatprep.subr.bf16.mxu0 0
    %132 = vmatpush1.bf16.msra.mxu0 0
    %133 = vmatprep.subr.bf16.mxu0 0
    %134 = vmatpush1.bf16.msra.mxu0 0
    %135 = vmatprep.subr.bf16.mxu0 0
    %136 = vmatpush1.bf16.msra.mxu0 0
    %137 = vmatprep.subr.bf16.mxu0 0
    %138 = vmatpush1.bf16.msra.mxu0 0
    %139 = vmatprep.subr.bf16.mxu0 0
    %140 = vmatpush1.bf16.msra.mxu0 0
    %141 = vmatprep.subr.bf16.mxu0 0
    %142 = vmatpush1.bf16.msra.mxu0 0
    %143 = vmatprep.subr.bf16.mxu0 0
    %144 = vmatpush1.bf16.msra.mxu0 %v124
    %145 = vmatprep.subr.bf16.mxu0 0
    %146 = vmatpush1.bf16.msra.mxu0 %v123
    %147 = vmatprep.subr.bf16.mxu0 0
    %148 = vmatpush2.bf16.msra.mxu0 0
    %149 = vmatprep.subr.bf16.mxu0 0
    %150 = vmatpush2.bf16.msra.mxu0 0
    %151 = vmatprep.subr.bf16.mxu0 0
    %152 = vmatpush2.bf16.msra.mxu0 0
    %153 = vmatprep.subr.bf16.mxu0 0
    %154 = vmatpush2.bf16.msra.mxu0 0
    %155 = vmatprep.subr.bf16.mxu0 0
    %156 = vmatpush2.bf16.msra.mxu0 0
    %157 = vmatprep.subr.bf16.mxu0 0
    %158 = vmatpush2.bf16.msra.mxu0 0
    %159 = vmatprep.subr.bf16.mxu0 0
    %160 = vmatpush2.bf16.msra.mxu0 0
    %161 = vmatprep.subr.bf16.mxu0 0
    %162 = vmatpush2.bf16.msra.mxu0 0
    %163 = vmatprep.mubr.bf16.mxu0 0
    %164 = vmatmul.mubr.bf16.gmra.mxu0 %v129
    %v165 = vpop.f32.mrf.mxu0
    %v166 = vadd.f32 %v113, %v165
    %v167 = vpop.f32.mrf.mxu0
    %v168 = vpop.f32.mrf.mxu0
    %v169 = vadd.f32 %v113, %v168
    %v170 = vpop.f32.mrf.mxu0
    %171 = vdwg.mxu0
    %v172 = vld [vmem:[#allocation10] sm:$0xf]
    %v173 = vld [vmem:[#allocation10 + $0x4] sm:$0xf]
    %v174 = vld [vmem:[#allocation10 + $0x8] sm:$0xf]
    %v175 = vld [vmem:[#allocation10 + $0xc] sm:$0xf]
    %v176 = vld [vmem:[%s6] sm:$0x1]
    %v178 = vlaneseq
    %v179 = vshrl.u32 %v178, 7
    %v180 = vsub.s32 0, %v179
    %v181 = vrot.slane %v176, %v180
    %v187 = vunpack.c.l.b16 %v172
    %v188 = vunpack.c.l.b16 %v173
    %v189 = vunpack.c.l.b16 %v174
    %v190 = vunpack.c.l.b16 %v175
    %v191 = vpack.c.b16 %v188, %v187
    %v192 = vpack.c.b16 %v190, %v189
    %v196 = vsel %vm127, %v103, 0
    %198 = vmatprep.subr.bf16.mxu0 0
    %199 = vmatpush1.bf16.msra.mxu0 0
    %200 = vmatprep.subr.bf16.mxu0 0
    %201 = vmatpush1.bf16.msra.mxu0 0
    %202 = vmatprep.subr.bf16.mxu0 0
    %203 = vmatpush1.bf16.msra.mxu0 0
    %204 = vmatprep.subr.bf16.mxu0 0
    %205 = vmatpush1.bf16.msra.mxu0 0
    %206 = vmatprep.subr.bf16.mxu0 0
    %207 = vmatpush1.bf16.msra.mxu0 0
    %208 = vmatprep.subr.bf16.mxu0 0
    %209 = vmatpush1.bf16.msra.mxu0 0
    %210 = vmatprep.subr.bf16.mxu0 0
    %211 = vmatpush1.bf16.msra.mxu0 %v192
    %212 = vmatprep.subr.bf16.mxu0 0
    %213 = vmatpush1.bf16.msra.mxu0 %v191
    %214 = vmatprep.subr.bf16.mxu0 0
    %215 = vmatpush2.bf16.msra.mxu0 0
    %216 = vmatprep.subr.bf16.mxu0 0
    %217 = vmatpush2.bf16.msra.mxu0 0
    %218 = vmatprep.subr.bf16.mxu0 0
    %219 = vmatpush2.bf16.msra.mxu0 0
    %220 = vmatprep.subr.bf16.mxu0 0
    %221 = vmatpush2.bf16.msra.mxu0 0
    %222 = vmatprep.subr.bf16.mxu0 0
    %223 = vmatpush2.bf16.msra.mxu0 0
    %224 = vmatprep.subr.bf16.mxu0 0
    %225 = vmatpush2.bf16.msra.mxu0 0
    %226 = vmatprep.subr.bf16.mxu0 0
    %227 = vmatpush2.bf16.msra.mxu0 0
    %228 = vmatprep.subr.bf16.mxu0 0
    %229 = vmatpush2.bf16.msra.mxu0 0
    %230 = vmatprep.mubr.bf16.mxu0 0
    %231 = vmatmul.mubr.bf16.gmra.mxu0 %v196
    %v232 = vpop.f32.mrf.mxu0
    %v233 = vadd.f32 %v181, %v232
    %v234 = vpop.f32.mrf.mxu0
    %v235 = vpop.f32.mrf.mxu0
    %v236 = vadd.f32 %v181, %v235
    %v237 = vpop.f32.mrf.mxu0
    %238 = vdwg.mxu0
    %v239 = vpack.c.bf16 %v166, %v166
    %v240 = vpack.c.bf16 %v169, %v169
    %v241 = vpack.c.bf16 %v233, %v233
    %v242 = vpack.c.bf16 %v236, %v236
    %v244 = vsel %vm127, %v239, 0
    %v247 = vsel %vm127, %v241, 0
    %249 = vmatprep.subr.bf16.mxu0 0
    %250 = vmatpush1.bf16.xpose.msra.mxu0 0
    %251 = vmatprep.subr.bf16.mxu0 0
    %252 = vmatpush1.bf16.xpose.msra.mxu0 0
    %253 = vmatprep.subr.bf16.mxu0 0
    %254 = vmatpush1.bf16.xpose.msra.mxu0 0
    %255 = vmatprep.subr.bf16.mxu0 0
    %256 = vmatpush1.bf16.xpose.msra.mxu0 0
    %257 = vmatprep.subr.bf16.mxu0 0
    %258 = vmatpush1.bf16.xpose.msra.mxu0 0
    %259 = vmatprep.subr.bf16.mxu0 0
    %260 = vmatpush1.bf16.xpose.msra.mxu0 0
    %261 = vmatprep.subr.bf16.mxu0 0
    %262 = vmatpush1.bf16.xpose.msra.mxu0 0
    %263 = vmatprep.subr.bf16.mxu0 0
    %264 = vmatpush1.bf16.xpose.msra.mxu0 %v247
    %265 = vmatprep.subr.bf16.mxu0 0
    %266 = vmatpush2.bf16.xpose.msra.mxu0 0
    %267 = vmatprep.subr.bf16.mxu0 0
    %268 = vmatpush2.bf16.xpose.msra.mxu0 0
    %269 = vmatprep.subr.bf16.mxu0 0
    %270 = vmatpush2.bf16.xpose.msra.mxu0 0
    %271 = vmatprep.subr.bf16.mxu0 0
    %272 = vmatpush2.bf16.xpose.msra.mxu0 0
    %273 = vmatprep.subr.bf16.mxu0 0
    %274 = vmatpush2.bf16.xpose.msra.mxu0 0
    %275 = vmatprep.subr.bf16.mxu0 0
    %276 = vmatpush2.bf16.xpose.msra.mxu0 0
    %277 = vmatprep.subr.bf16.mxu0 0
    %278 = vmatpush2.bf16.xpose.msra.mxu0 0
    %279 = vmatprep.subr.bf16.mxu0 0
    %280 = vmatpush2.bf16.xpose.msra.mxu0 0
    %281 = vmatprep.mubr.bf16.mxu0 0
    %282 = vmatmul.mubr.bf16.gmra.mxu0 %v244
    %v283 = vpop.f32.mrf.mxu0
    %v284 = vadd.f32 0.0, %v283
    %v285 = vpop.f32.mrf.mxu0
    %v286 = vpop.f32.mrf.mxu0
    %v287 = vpop.f32.mrf.mxu0
    %288 = vdwg.mxu0
    %v290 = vsel %vm127, %v240, 0
    %v293 = vsel %vm127, %v242, 0
    %295 = vmatprep.subr.bf16.mxu0 0
    %296 = vmatpush1.bf16.xpose.msra.mxu0 0
    %297 = vmatprep.subr.bf16.mxu0 0
    %298 = vmatpush1.bf16.xpose.msra.mxu0 0
    %299 = vmatprep.subr.bf16.mxu0 0
    %300 = vmatpush1.bf16.xpose.msra.mxu0 0
    %301 = vmatprep.subr.bf16.mxu0 0
    %302 = vmatpush1.bf16.xpose.msra.mxu0 0
    %303 = vmatprep.subr.bf16.mxu0 0
    %304 = vmatpush1.bf16.xpose.msra.mxu0 0
    %305 = vmatprep.subr.bf16.mxu0 0
    %306 = vmatpush1.bf16.xpose.msra.mxu0 0
    %307 = vmatprep.subr.bf16.mxu0 0
    %308 = vmatpush1.bf16.xpose.msra.mxu0 0
    %309 = vmatprep.subr.bf16.mxu0 0
    %310 = vmatpush1.bf16.xpose.msra.mxu0 %v293
    %311 = vmatprep.subr.bf16.mxu0 0
    %312 = vmatpush2.bf16.xpose.msra.mxu0 0
    %313 = vmatprep.subr.bf16.mxu0 0
    %314 = vmatpush2.bf16.xpose.msra.mxu0 0
    %315 = vmatprep.subr.bf16.mxu0 0
    %316 = vmatpush2.bf16.xpose.msra.mxu0 0
    %317 = vmatprep.subr.bf16.mxu0 0
    %318 = vmatpush2.bf16.xpose.msra.mxu0 0
    %319 = vmatprep.subr.bf16.mxu0 0
    %320 = vmatpush2.bf16.xpose.msra.mxu0 0
    %321 = vmatprep.subr.bf16.mxu0 0
    %322 = vmatpush2.bf16.xpose.msra.mxu0 0
    %323 = vmatprep.subr.bf16.mxu0 0
    %324 = vmatpush2.bf16.xpose.msra.mxu0 0
    %325 = vmatprep.subr.bf16.mxu0 0
    %326 = vmatpush2.bf16.xpose.msra.mxu0 0
    %327 = vmatprep.mubr.bf16.mxu0 0
    %328 = vmatmul.mubr.bf16.gmra.mxu0 %v290
    %v329 = vpop.f32.mrf.mxu0
    %v330 = vadd.f32 0.0, %v329
    %v331 = vpop.f32.mrf.mxu0
    %v332 = vpop.f32.mrf.mxu0
    %v333 = vpop.f32.mrf.mxu0
    %334 = vdwg.mxu0
    %vm335 = vcmask 64512
    %v336 = vsel %vm335, %v284, -inf
    %337 = vmax.xlane.f32.xlu0 %v336
    %v338 = vpop.xlane.xlu0 %337
    %v339 = vsel %vm335, %v330, -inf
    %340 = vmax.xlane.f32.xlu0 %v339
    %v341 = vpop.xlane.xlu0 %340
    %v342 = vsub.f32 %v284, %v338
    %v343 = vsub.f32 %v330, %v341
    %v344 = vmul.f32 %v342, 1.442695
    %v345 = vpow.pop %v344
    %v346 = vmul.f32 %v343, 1.442695
    %v347 = vpow.pop %v346
    %v348 = vsel %vm335, %v345, 0.0
    %349 = vadd.xlane.f32.xlu0 %v348
    %v350 = vpop.xlane.xlu0 %349
    %v351 = vsel %vm335, %v347, 0.0
    %352 = vadd.xlane.f32.xlu0 %v351
    %v353 = vpop.xlane.xlu0 %352
    %v354 = vrcp.pop %v350
    %v355 = vrcp.pop %v353
    %v356 = vpack.c.bf16 %v345, %v345
    %v357 = vpack.c.bf16 %v347, %v347
    %v358 = vpack.c.bf16 %v354, %v354
    %v359 = vpack.c.bf16 %v355, %v355
    %v360 = vmul.bf16 %v356, %v358
    %v361 = vmul.bf16 %v357, %v359
    %v362 = vld [vmem:[#allocation7] sm:$0xff]
    %v363 = vld [vmem:[#allocation7 + $0x8] sm:$0xff]
    %v364 = vpack.c.bf16 %v362, %v362
    %v365 = vpack.c.bf16 %v363, %v363
    %v367 = vsel %vm335, %v360, 0
    %vm369 = vcmask 1043456
    %v371 = vsel %vm369, %v364, 0
    %373 = vmatprep.subr.bf16.mxu0 0
    %374 = vmatpush1.bf16.msra.mxu0 0
    %375 = vmatprep.subr.bf16.mxu0 0
    %376 = vmatpush1.bf16.msra.mxu0 0
    %377 = vmatprep.subr.bf16.mxu0 0
    %378 = vmatpush1.bf16.msra.mxu0 0
    %379 = vmatprep.subr.bf16.mxu0 0
    %380 = vmatpush1.bf16.msra.mxu0 0
    %381 = vmatprep.subr.bf16.mxu0 0
    %382 = vmatpush1.bf16.msra.mxu0 0
    %383 = vmatprep.subr.bf16.mxu0 0
    %384 = vmatpush1.bf16.msra.mxu0 0
    %385 = vmatprep.subr.bf16.mxu0 0
    %386 = vmatpush1.bf16.msra.mxu0 0
    %387 = vmatprep.subr.bf16.mxu0 0
    %388 = vmatpush1.bf16.msra.mxu0 %v371
    %389 = vmatprep.subr.bf16.mxu0 0
    %390 = vmatpush2.bf16.msra.mxu0 0
    %391 = vmatprep.subr.bf16.mxu0 0
    %392 = vmatpush2.bf16.msra.mxu0 0
    %393 = vmatprep.subr.bf16.mxu0 0
    %394 = vmatpush2.bf16.msra.mxu0 0
    %395 = vmatprep.subr.bf16.mxu0 0
    %396 = vmatpush2.bf16.msra.mxu0 0
    %397 = vmatprep.subr.bf16.mxu0 0
    %398 = vmatpush2.bf16.msra.mxu0 0
    %399 = vmatprep.subr.bf16.mxu0 0
    %400 = vmatpush2.bf16.msra.mxu0 0
    %401 = vmatprep.subr.bf16.mxu0 0
    %402 = vmatpush2.bf16.msra.mxu0 0
    %403 = vmatprep.subr.bf16.mxu0 0
    %404 = vmatpush2.bf16.msra.mxu0 0
    %405 = vmatprep.mubr.bf16.mxu0 0
    %406 = vmatmul.mubr.bf16.gmra.mxu0 %v367
    %v407 = vpop.f32.mrf.mxu0
    %v408 = vadd.f32 0.0, %v407
    %v409 = vpop.f32.mrf.mxu0
    %v410 = vpop.f32.mrf.mxu0
    %v411 = vpop.f32.mrf.mxu0
    %412 = vdwg.mxu0
    %v414 = vsel %vm335, %v361, 0
    %v417 = vsel %vm369, %v365, 0
    %419 = vmatprep.subr.bf16.mxu0 0
    %420 = vmatpush1.bf16.msra.mxu0 0
    %421 = vmatprep.subr.bf16.mxu0 0
    %422 = vmatpush1.bf16.msra.mxu0 0
    %423 = vmatprep.subr.bf16.mxu0 0
    %424 = vmatpush1.bf16.msra.mxu0 0
    %425 = vmatprep.subr.bf16.mxu0 0
    %426 = vmatpush1.bf16.msra.mxu0 0
    %427 = vmatprep.subr.bf16.mxu0 0
    %428 = vmatpush1.bf16.msra.mxu0 0
    %429 = vmatprep.subr.bf16.mxu0 0
    %430 = vmatpush1.bf16.msra.mxu0 0
    %431 = vmatprep.subr.bf16.mxu0 0
    %432 = vmatpush1.bf16.msra.mxu0 0
    %433 = vmatprep.subr.bf16.mxu0 0
    %434 = vmatpush1.bf16.msra.mxu0 %v417
    %435 = vmatprep.subr.bf16.mxu0 0
    %436 = vmatpush2.bf16.msra.mxu0 0
    %437 = vmatprep.subr.bf16.mxu0 0
    %438 = vmatpush2.bf16.msra.mxu0 0
    %439 = vmatprep.subr.bf16.mxu0 0
    %440 = vmatpush2.bf16.msra.mxu0 0
    %441 = vmatprep.subr.bf16.mxu0 0
    %442 = vmatpush2.bf16.msra.mxu0 0
    %443 = vmatprep.subr.bf16.mxu0 0
    %444 = vmatpush2.bf16.msra.mxu0 0
    %445 = vmatprep.subr.bf16.mxu0 0
    %446 = vmatpush2.bf16.msra.mxu0 0
    %447 = vmatprep.subr.bf16.mxu0 0
    %448 = vmatpush2.bf16.msra.mxu0 0
    %449 = vmatprep.subr.bf16.mxu0 0
    %450 = vmatpush2.bf16.msra.mxu0 0
    %451 = vmatprep.mubr.bf16.mxu0 0
    %452 = vmatmul.mubr.bf16.gmra.mxu0 %v414
    %v453 = vpop.f32.mrf.mxu0
    %v454 = vadd.f32 0.0, %v453
    %v455 = vpop.f32.mrf.mxu0
    %v456 = vpop.f32.mrf.mxu0
    %v457 = vpop.f32.mrf.mxu0
    %458 = vdwg.mxu0
    %v459 = vcombine.high %v408, 0.0
    %v461 = vunpack.c.l.s4 1983009808
    %v462 = vunpack.c.0.s8 %v461
    %v463 = vlaneseq
    %v464 = vshrl.u32 %v463, 7
    %v465 = vsub.s32 %v462, %v464
    %v466 = vrot.slane %v408, %v465
    %v468 = vunpack.c.l.s4 1983009808
    %v469 = vunpack.c.0.s8 %v468
    %v470 = vlaneseq
    %v471 = vshrl.u32 %v470, 7
    %v472 = vsub.s32 %v469, %v471
    %v473 = vrot.slane %v459, %v472
    %v474 = vcombine.high %v466, 0.0
    %v476 = vunpack.c.l.s4 1934713408
    %v477 = vunpack.c.0.s8 %v476
    %v478 = vlaneseq
    %v479 = vshrl.u32 %v478, 7
    %v480 = vsub.s32 %v477, %v479
    %v481 = vrot.slane %v466, %v480
    %v483 = vunpack.c.l.s4 1934713408
    %v484 = vunpack.c.0.s8 %v483
    %v485 = vlaneseq
    %v486 = vshrl.u32 %v485, 7
    %v487 = vsub.s32 %v484, %v486
    %v488 = vrot.slane %v474, %v487
    %v489 = vcombine.high %v473, 0.0
    %v491 = vunpack.c.l.s4 1934713408
    %v492 = vunpack.c.0.s8 %v491
    %v493 = vlaneseq
    %v494 = vshrl.u32 %v493, 7
    %v495 = vsub.s32 %v492, %v494
    %v496 = vrot.slane %v473, %v495
    %v498 = vunpack.c.l.s4 1934713408
    %v499 = vunpack.c.0.s8 %v498
    %v500 = vlaneseq
    %v501 = vshrl.u32 %v500, 7
    %v502 = vsub.s32 %v499, %v501
    %v503 = vrot.slane %v489, %v502
    %v504 = vcombine.high %v481, 0.0
    %v505 = vcombine.high %v488, 0.0
    %v506 = vcombine.high %v496, 0.0
    %v507 = vcombine.high %v503, 0.0
    %v508 = vcombine.high %v454, 0.0
    %v510 = vunpack.c.l.s4 1983009808
    %v511 = vunpack.c.0.s8 %v510
    %v512 = vlaneseq
    %v513 = vshrl.u32 %v512, 7
    %v514 = vsub.s32 %v511, %v513
    %v515 = vrot.slane %v454, %v514
    %v517 = vunpack.c.l.s4 1983009808
    %v518 = vunpack.c.0.s8 %v517
    %v519 = vlaneseq
    %v520 = vshrl.u32 %v519, 7
    %v521 = vsub.s32 %v518, %v520
    %v522 = vrot.slane %v508, %v521
    %v523 = vcombine.high %v515, 0.0
    %v525 = vunpack.c.l.s4 1934713408
    %v526 = vunpack.c.0.s8 %v525
    %v527 = vlaneseq
    %v528 = vshrl.u32 %v527, 7
    %v529 = vsub.s32 %v526, %v528
    %v530 = vrot.slane %v515, %v529
    %v532 = vunpack.c.l.s4 1934713408
    %v533 = vunpack.c.0.s8 %v532
    %v534 = vlaneseq
    %v535 = vshrl.u32 %v534, 7
    %v536 = vsub.s32 %v533, %v535
    %v537 = vrot.slane %v523, %v536
    %v538 = vcombine.high %v522, 0.0
    %v540 = vunpack.c.l.s4 1934713408
    %v541 = vunpack.c.0.s8 %v540
    %v542 = vlaneseq
    %v543 = vshrl.u32 %v542, 7
    %v544 = vsub.s32 %v541, %v543
    %v545 = vrot.slane %v522, %v544
    %v547 = vunpack.c.l.s4 1934713408
    %v548 = vunpack.c.0.s8 %v547
    %v549 = vlaneseq
    %v550 = vshrl.u32 %v549, 7
    %v551 = vsub.s32 %v548, %v550
    %v552 = vrot.slane %v538, %v551
    %v553 = vcombine.high %v530, 0.0
    %v554 = vcombine.high %v537, 0.0
    %v555 = vcombine.high %v545, 0.0
    %v556 = vcombine.high %v552, 0.0
    %559 = vrot.lane.b32.xlu0 %v504, 32
    %v560 = vpop.permute.xlu0 %559
    %561 = vrot.lane.b32.xlu0 %v553, 32
    %v562 = vpop.permute.xlu0 %561
    %567 = vrot.lane.b32.xlu0 %v488, 64
    %v568 = vpop.permute.xlu0 %567
    %569 = vrot.lane.b32.xlu0 %v537, 64
    %v570 = vpop.permute.xlu0 %569
    %575 = vrot.lane.b32.xlu0 %v505, 96
    %v576 = vpop.permute.xlu0 %575
    %577 = vrot.lane.b32.xlu0 %v554, 96
    %v578 = vpop.permute.xlu0 %577
    %583 = vrot.lane.b32.xlu0 %v506, 32
    %v584 = vpop.permute.xlu0 %583
    %585 = vrot.lane.b32.xlu0 %v555, 32
    %v586 = vpop.permute.xlu0 %585
    %591 = vrot.lane.b32.xlu0 %v503, 64
    %v592 = vpop.permute.xlu0 %591
    %593 = vrot.lane.b32.xlu0 %v552, 64
    %v594 = vpop.permute.xlu0 %593
    %599 = vrot.lane.b32.xlu0 %v507, 96
    %v600 = vpop.permute.xlu0 %599
    %601 = vrot.lane.b32.xlu0 %v556, 96
    %v602 = vpop.permute.xlu0 %601
    %v605 = vsel %vm127, %v481, %v560
    %v606 = vsel %vm127, %v530, %v562
    %vm607 = vcmask 523264
    %v608 = vsel %vm607, %v605, %v568
    %v609 = vsel %vm607, %v606, %v570
    %vm610 = vcmask 785408
    %v611 = vsel %vm610, %v608, %v576
    %v612 = vsel %vm610, %v609, %v578
    %v613 = vsel %vm127, %v496, %v584
    %v614 = vsel %vm127, %v545, %v586
    %v615 = vsel %vm607, %v613, %v592
    %v616 = vsel %vm607, %v614, %v594
    %v617 = vsel %vm610, %v615, %v600
    %v618 = vsel %vm610, %v616, %v602
    %v623 = vcombine.low %v611, %v617
    %v625 = vunpack.c.l.s4 1966171168
    %v626 = vunpack.c.0.s8 %v625
    %v627 = vlaneseq
    %v628 = vshrl.u32 %v627, 7
    %v629 = vsub.s32 %v626, %v628
    %v630 = vrot.slane %v623, %v629
    %v632 = vunpack.c.l.s4 1966171168
    %v633 = vunpack.c.0.s8 %v632
    %v634 = vlaneseq
    %v635 = vshrl.u32 %v634, 7
    %v636 = vsub.s32 %v633, %v635
    %v637 = vrot.slane %v630, %v636
    %v638 = vcombine.low %v612, %v618
    %v640 = vunpack.c.l.s4 1966171168
    %v641 = vunpack.c.0.s8 %v640
    %v642 = vlaneseq
    %v643 = vshrl.u32 %v642, 7
    %v644 = vsub.s32 %v641, %v643
    %v645 = vrot.slane %v638, %v644
    %v647 = vunpack.c.l.s4 1966171168
    %v648 = vunpack.c.0.s8 %v647
    %v649 = vlaneseq
    %v650 = vshrl.u32 %v649, 7
    %v651 = vsub.s32 %v648, %v650
    %v652 = vrot.slane %v645, %v651
    %v655 = vlaneseq
    %vm656 = vcmp.ge.s32.totalorder %v655, 0
    %vm657 = vcmp.lt.s32.totalorder %v655, 256
    %vm658 = vmand %vm656, %vm657
    %659 = vst.msk [vmem:[#allocation11] sm:$0x3] %vm658, %v637
    %660 = vst.msk [vmem:[#allocation11 + $0x2] sm:$0x3] %vm658, %v652
    %v662 = vunpack.c.l.s4 1983009808
    %v663 = vunpack.c.0.s8 %v662
    %v664 = vlaneseq
    %v665 = vshrl.u32 %v664, 7
    %v666 = vsub.s32 %v663, %v665
    %v667 = vrot.slane %v360, %v666
    %v668 = vcombine.high %v667, 0
    %v670 = vunpack.c.l.s4 1934713408
    %v671 = vunpack.c.0.s8 %v670
    %v672 = vlaneseq
    %v673 = vshrl.u32 %v672, 7
    %v674 = vsub.s32 %v671, %v673
    %v675 = vrot.slane %v667, %v674
    %v677 = vunpack.c.l.s4 1934713408
    %v678 = vunpack.c.0.s8 %v677
    %v679 = vlaneseq
    %v680 = vshrl.u32 %v679, 7
    %v681 = vsub.s32 %v678, %v680
    %v682 = vrot.slane %v668, %v681
    %v683 = vcombine.high %v675, 0
    %v684 = vcombine.high %v682, 0
    %v686 = vunpack.c.l.s4 1983009808
    %v687 = vunpack.c.0.s8 %v686
    %v688 = vlaneseq
    %v689 = vshrl.u32 %v688, 7
    %v690 = vsub.s32 %v687, %v689
    %v691 = vrot.slane %v361, %v690
    %v692 = vcombine.high %v691, 0
    %v694 = vunpack.c.l.s4 1934713408
    %v695 = vunpack.c.0.s8 %v694
    %v696 = vlaneseq
    %v697 = vshrl.u32 %v696, 7
    %v698 = vsub.s32 %v695, %v697
    %v699 = vrot.slane %v691, %v698
    %v701 = vunpack.c.l.s4 1934713408
    %v702 = vunpack.c.0.s8 %v701
    %v703 = vlaneseq
    %v704 = vshrl.u32 %v703, 7
    %v705 = vsub.s32 %v702, %v704
    %v706 = vrot.slane %v692, %v705
    %v707 = vcombine.high %v699, 0
    %v708 = vcombine.high %v706, 0
    %v711 = vpack.i.b16 0, %v675
    %v712 = vshrl.u32 %v675, 16
    %v713 = vshrl.u32 0, 16
    %v714 = vpack.i.b16 %v713, %v712
    %v716 = vpack.i.b16 0, %v683
    %v717 = vshrl.u32 %v683, 16
    %v718 = vpack.i.b16 %v713, %v717
    %v720 = vpack.i.b16 0, %v682
    %v721 = vshrl.u32 %v682, 16
    %v722 = vpack.i.b16 %v713, %v721
    %v724 = vpack.i.b16 0, %v684
    %v725 = vshrl.u32 %v684, 16
    %v726 = vpack.i.b16 %v713, %v725
    %v728 = vpack.i.b16 0, %v699
    %v729 = vshrl.u32 %v699, 16
    %v730 = vpack.i.b16 %v713, %v729
    %v732 = vpack.i.b16 0, %v707
    %v733 = vshrl.u32 %v707, 16
    %v734 = vpack.i.b16 %v713, %v733
    %v736 = vpack.i.b16 0, %v706
    %v737 = vshrl.u32 %v706, 16
    %v738 = vpack.i.b16 %v713, %v737
    %v740 = vpack.i.b16 0, %v708
    %v741 = vshrl.u32 %v708, 16
    %v742 = vpack.i.b16 %v713, %v741
    %743 = vrot.lane.b32.xlu0 %v714, 8
    %v744 = vpop.permute.xlu0 %743
    %745 = vrot.lane.b32.xlu0 %v730, 8
    %v746 = vpop.permute.xlu0 %745
    %747 = vrot.lane.b32.xlu0 %v716, 16
    %v748 = vpop.permute.xlu0 %747
    %749 = vrot.lane.b32.xlu0 %v732, 16
    %v750 = vpop.permute.xlu0 %749
    %751 = vrot.lane.b32.xlu0 %v718, 24
    %v752 = vpop.permute.xlu0 %751
    %753 = vrot.lane.b32.xlu0 %v734, 24
    %v754 = vpop.permute.xlu0 %753
    %755 = vrot.lane.b32.xlu0 %v720, 32
    %v756 = vpop.permute.xlu0 %755
    %757 = vrot.lane.b32.xlu0 %v736, 32
    %v758 = vpop.permute.xlu0 %757
    %759 = vrot.lane.b32.xlu0 %v722, 40
    %v760 = vpop.permute.xlu0 %759
    %761 = vrot.lane.b32.xlu0 %v738, 40
    %v762 = vpop.permute.xlu0 %761
    %763 = vrot.lane.b32.xlu0 %v724, 48
    %v764 = vpop.permute.xlu0 %763
    %765 = vrot.lane.b32.xlu0 %v740, 48
    %v766 = vpop.permute.xlu0 %765
    %767 = vrot.lane.b32.xlu0 %v726, 56
    %v768 = vpop.permute.xlu0 %767
    %769 = vrot.lane.b32.xlu0 %v742, 56
    %v770 = vpop.permute.xlu0 %769
    %v773 = vsel %vm335, %v711, %v744
    %v776 = vsel %vm335, %v728, %v746
    %vm777 = vcmask 130048
    %v779 = vsel %vm777, %v773, %v748
    %v781 = vsel %vm777, %v776, %v750
    %vm782 = vcmask 195584
    %v784 = vsel %vm782, %v779, %v752
    %v786 = vsel %vm782, %v781, %v754
    %v788 = vsel %vm127, %v784, %v756
    %v790 = vsel %vm127, %v786, %v758
    %vm791 = vcmask 326656
    %v793 = vsel %vm791, %v788, %v760
    %v795 = vsel %vm791, %v790, %v762
    %vm796 = vcmask 392192
    %v798 = vsel %vm796, %v793, %v764
    %v800 = vsel %vm796, %v795, %v766
    %vm801 = vcmask 457728
    %v803 = vsel %vm801, %v798, %v768
    %v806 = vsel %vm801, %v800, %v770
    %vm808 = vcmask 516096
    %vm809 = vsmask.f32 256
    %vm810 = vmand %vm808, %vm809
    %v811 = vld [vmem:[%s8] sm:$0x1]
    %v812 = vsel %vm810, %v803, %v811
    %813 = vst [vmem:[%s8] sm:$0x1] %v812
    %v814 = vld [vmem:[%s8 + $0x1] sm:$0x1]
    %v815 = vsel %vm810, %v806, %v814
    %816 = vst [vmem:[%s8 + $0x1] sm:$0x1] %v815
    // Predicated region
    $region50: #{tpu_custom_call.1} parent=1 // pred_check
      _
    $region51: #{tpu_custom_call.1} parent=1 // pred_check_branch
      %818 = sbr.rel (0) target = $region53
    $region52: #{tpu_custom_call.1} parent=1 // pred_region
      %s820 = ssub.s32 64, 64
      %821 = vsyncadd [#allocation4], %s820
      %s822 = sshll.u32 [#allocation11], 4
      %s823 = int_to_ptr.vmem [resolvable:$true] %s822
      %828 = dma.vmem_to_hbm [thread:$0]  %s823, 64, %s7, [#allocation4], 32, 32, 2
    $region53: #{tpu_custom_call.1} parent=1 // pred_fallthru
      _
    // Predicated region
    $region54: #{tpu_custom_call.1} parent=1 // pred_check
      _
    $region55: #{tpu_custom_call.1} parent=1 // pred_check_branch
      %830 = sbr.rel (0) target = $region57
    $region56: #{tpu_custom_call.1} parent=1 // pred_region
      _
    $region57: #{tpu_custom_call.1} parent=1 // pred_fallthru
      _
    // Predicated region
    $region58: #{tpu_custom_call.1} parent=1 // pred_check
      _
    $region59: #{tpu_custom_call.1} parent=1 // pred_check_branch
      %832 = sbr.rel (0) target = $region61
    $region60: #{tpu_custom_call.1} parent=1 // pred_region
      %833 = dma.done [#allocation4], 64
    $region61: #{tpu_custom_call.1} parent=1 // pred_fallthru
      _
    // Predicated region
    $region62: #{tpu_custom_call.1} parent=1 // pred_check
      _
    $region63: #{tpu_custom_call.1} parent=1 // pred_check_branch
      %835 = sbr.rel (0) target = $region65
    $region64: #{tpu_custom_call.1} parent=1 // pred_region
      _
    $region65: #{tpu_custom_call.1} parent=1 // pred_fallthru
      _
    %836 = vsyncpa [#allocation3], 1
    %837 = vsyncpa [#allocation6], 1
    %838 = vsyncpa [#allocation9], 1
    %839 = vsyncpa [#allocation4], 1

</llo_original>
